<compile_context>
chip_gen: v5e
topology: v5e:2x2
jax: 0.10.0
libtpu: 0.0.40
codegen_flags: <defaults>
</compile_context>

<pallas_src>
import jax
import jax.numpy as jnp
from jax.experimental import pallas as pl
from jax.experimental.pallas import tpu as pltpu


def _minmax_kernel(x_ref, o_ref):
    # x_ref / o_ref: (N, C, HW).  Per-channel min/max over (N, HW), then
    # normalize using a single per-channel reciprocal (not a per-element
    # divide).
    x = x_ref[...]
    mn = jnp.min(jnp.min(x, axis=2, keepdims=True), axis=0, keepdims=True)  # (1, C, 1)
    mx = jnp.max(jnp.max(x, axis=2, keepdims=True), axis=0, keepdims=True)  # (1, C, 1)
    inv = 1.0 / (mx - mn)                                                    # (1, C, 1)
    o_ref[...] = ((x - mn) * inv).astype(o_ref.dtype)


def min_max_normalize(x: jnp.ndarray) -> jnp.ndarray:
    """Equivalent of MinMaxNormalize.forward for NCHW input."""
    N, C, H, W = x.shape

    # Free, contiguous reshape (no transpose, no extra HBM round trip).
    x3d = x.reshape(N, C, H * W)

    out3d = pl.pallas_call(
        _minmax_kernel,
        out_shape=jax.ShapeDtypeStruct((N, C, H * W), x.dtype),
        in_specs=[pl.BlockSpec(memory_space=pltpu.MemorySpace.VMEM)],
        out_specs=pl.BlockSpec(memory_space=pltpu.MemorySpace.VMEM),
    )(x3d)

    # Free reshape back to NCHW.
    return out3d.reshape(N, C, H, W)


if __name__ == "__main__":
    key = jax.random.PRNGKey(0)
    x = jax.random.normal(key, (2, 4, 16, 16), dtype=jnp.float32)

    y = min_max_normalize(x)
    y = jax.block_until_ready(y)
    assert y.shape == (2, 4, 16, 16), y.shape

    # Pure-JAX reference (same math as the PyTorch module, different codepath).
    mn = jnp.min(x, axis=(0, 2, 3), keepdims=True)
    mx = jnp.max(x, axis=(0, 2, 3), keepdims=True)
    ref = (x - mn) / (mx - mn)
    assert jnp.allclose(y, ref, atol=1e-6, rtol=1e-6)

    # Each channel of the output should span [0, 1].
    assert jnp.allclose(jnp.min(y, axis=(0, 2, 3)), 0.0, atol=1e-6)
    assert jnp.allclose(jnp.max(y, axis=(0, 2, 3)), 1.0, atol=1e-6)

    print("KERNEL_OK")
</pallas_src>

<mosaic_0001>
module attributes {stable_mosaic.version = 11 : i64} {
  func.func @_minmax_kernel(%arg0: memref<2x4x256xf32, #tpu.memory_space<vmem>>, %arg1: memref<2x4x256xf32, #tpu.memory_space<vmem>>) attributes {dimension_semantics = [], scalar_prefetch = 0 : i64, scratch_operands = 0 : i64, tpu.core_type = #tpu.core_type<tc>} {
    %c0 = arith.constant 0 : index
    %c0_0 = arith.constant 0 : index
    %c0_1 = arith.constant 0 : index
    %0 = vector.load %arg0[%c0, %c0_0, %c0_1] : memref<2x4x256xf32, #tpu.memory_space<vmem>>, vector<2x4x256xf32>
    %cst = arith.constant dense<0x7F800000> : vector<2x4xf32>
    %1 = vector.multi_reduction <minimumf>, %0, %cst [2] : vector<2x4x256xf32> to vector<2x4xf32>
    %2 = vector.shape_cast %1 : vector<2x4xf32> to vector<2x4x1xf32>
    %cst_2 = arith.constant dense<0x7F800000> : vector<4x1xf32>
    %3 = vector.multi_reduction <minimumf>, %2, %cst_2 [0] : vector<2x4x1xf32> to vector<4x1xf32>
    %4 = vector.shape_cast %3 : vector<4x1xf32> to vector<1x4x1xf32>
    %cst_3 = arith.constant dense<0xFF800000> : vector<2x4xf32>
    %5 = vector.multi_reduction <maximumf>, %0, %cst_3 [2] : vector<2x4x256xf32> to vector<2x4xf32>
    %6 = vector.shape_cast %5 : vector<2x4xf32> to vector<2x4x1xf32>
    %cst_4 = arith.constant dense<0xFF800000> : vector<4x1xf32>
    %7 = vector.multi_reduction <maximumf>, %6, %cst_4 [0] : vector<2x4x1xf32> to vector<4x1xf32>
    %8 = vector.shape_cast %7 : vector<4x1xf32> to vector<1x4x1xf32>
    %9 = arith.subf %8, %4 : vector<1x4x1xf32>
    %cst_5 = arith.constant 1.000000e+00 : f32
    %10 = vector.broadcast %cst_5 : f32 to vector<1x4x1xf32>
    %11 = arith.divf %10, %9 : vector<1x4x1xf32>
    %12 = vector.broadcast %4 : vector<1x4x1xf32> to vector<2x4x256xf32>
    %13 = arith.subf %0, %12 : vector<2x4x256xf32>
    %14 = vector.broadcast %11 : vector<1x4x1xf32> to vector<2x4x256xf32>
    %15 = arith.mulf %13, %14 : vector<2x4x256xf32>
    %c0_6 = arith.constant 0 : index
    %c0_7 = arith.constant 0 : index
    %c0_8 = arith.constant 0 : index
    %16 = vector.load %arg1[%c0_6, %c0_7, %c0_8] : memref<2x4x256xf32, #tpu.memory_space<vmem>>, vector<2x4x256xf32>
    tpu.vector_store %arg1[%c0_6, %c0_7, %c0_8], %15 {strides = array<i32>} : memref<2x4x256xf32, #tpu.memory_space<vmem>>, vector<2x4x256xf32>,
    return
  }
}

</mosaic_0001>

<llo_original>
// kernel: tpu_custom_call.1
$region0: #{tpu_custom_call.1}
  #allocation0 [shape = 'u32[]', space=smem, size = 0x4, offset = 0x4, fixed_abs, tag = 'smem constant byte address 0x4 - core index']
  #allocation1 [shape = 'u32[72,128]{1,0:T(1,128)}', space=vmem, size = 0x9000, scoped, tag = 'internal scratch']
  %s0 = inlined_call_operand.hbm [shape: f32[2,4,256], index: 0, kind: input, shape index: {}]
  %s1 = inlined_call_operand.hbm [shape: f32[2,4,256], index: 1, kind: output, shape index: {}]
  %s2 = sld [smem:[#allocation0]]
  $region18: #{tpu_custom_call.1} parent=0
    _
  %s4 = ssub.s32 1, %s2
  %s5 = scalar_select 0, %s4, %s2
  $region1: #{tpu_custom_call.1} parent=0
    #allocation2 [shape = 'u8[8192]{0}', space=vmem, size = 0x2000, scoped, tag = 'input window, operand 0, single buffered']
    #allocation3 [shape = 's32[1]{0}', space=sflag, size = 0x4, scoped, tag = 'scoped memory for tpu_custom_call.1']
    #allocation4 [shape = 's32[1]{0}', space=sflag, size = 0x4, scoped, tag = 'scoped memory for tpu_custom_call.1']
    #allocation5 [shape = 'u8[8192]{0}', space=vmem, size = 0x2000, scoped, tag = 'output window, operand 0, single buffered']
    %6 = vsyncpa [#allocation3], 0
    %7 = vsyncpa [#allocation4], 0
    // Predicated region
    $region2: #{tpu_custom_call.1} parent=1 // pred_check
      _
    $region3: #{tpu_custom_call.1} parent=1 // pred_check_branch
      %9 = sbr.rel (0) target = $region5
    $region4: #{tpu_custom_call.1} parent=1 // pred_region
      %11 = vsyncadd [#allocation3], 0
      %s12 = sshll.u32 %s0, 4
      %s13 = int_to_ptr.hbm [resolvable:$true] %s12
      %s14 = sshll.u32 [#allocation2], 4
      %s15 = int_to_ptr.vmem [resolvable:$true] %s14
      %20 = dma.hbm_to_vmem [thread:$0]  %s13, 256, %s15, [#allocation3], 128, 128, 8
    $region5: #{tpu_custom_call.1} parent=1 // pred_fallthru
      _
    // Predicated region
    $region6: #{tpu_custom_call.1} parent=1 // pred_check
      _
    $region7: #{tpu_custom_call.1} parent=1 // pred_check_branch
      %22 = sbr.rel (0) target = $region9
    $region8: #{tpu_custom_call.1} parent=1 // pred_region
      %24 = dma.done [#allocation3], 256
    $region9: #{tpu_custom_call.1} parent=1 // pred_fallthru
      _
    %v25 = vld [vmem:[#allocation2] sm:$0xff]
    %v26 = vld [vmem:[#allocation2 + $0x8] sm:$0xff]
    %29 = vst [vmem:[#allocation1] ss:$2 sm:$0xff] %v25
    %v30 = vld.sshfl [vmem:[#allocation1] sm:$0xff pattern:$0x75316420]
    %v31 = vld.sshfl [vmem:[#allocation1 + $0x8] sm:$0xff pattern:$0x75316420]
    %s32 = scalar_lea.vmem [#allocation1], 16
    %33 = vst [vmem:[%s32] ss:$2 sm:$0xff] %v26
    %v34 = vld.sshfl [vmem:[#allocation1 + $0x10] sm:$0xff pattern:$0x75316420]
    %v35 = vld.sshfl [vmem:[#allocation1 + $0x18] sm:$0xff pattern:$0x75316420]
    %vm40 = vcmask 1043456
    %v41 = vsel %vm40, %v30, inf
    %v42 = vsel %vm40, %v31, inf
    %v43 = vmin.f32 %v41, %v42
    %44 = vmin.xlane.f32.xlu0 %v43
    %v45 = vpop.xlane.xlu0 %44
    %v46 = vsel %vm40, %v34, inf
    %v47 = vsel %vm40, %v35, inf
    %v48 = vmin.f32 %v46, %v47
    %49 = vmin.xlane.f32.xlu0 %v48
    %v50 = vpop.xlane.xlu0 %49
    %v51 = vsel %vm40, %v45, inf
    %v52 = vsel %vm40, %v50, inf
    %v53 = vmin.f32 %v51, %v52
    %54 = vst [vmem:[#allocation1] ss:$2 sm:$0xff] %v25
    %v55 = vld.sshfl [vmem:[#allocation1] sm:$0xff pattern:$0x75316420]
    %v56 = vld.sshfl [vmem:[#allocation1 + $0x8] sm:$0xff pattern:$0x75316420]
    %s57 = scalar_lea.vmem [#allocation1], 16
    %58 = vst [vmem:[%s57] ss:$2 sm:$0xff] %v26
    %v59 = vld.sshfl [vmem:[#allocation1 + $0x10] sm:$0xff pattern:$0x75316420]
    %v60 = vld.sshfl [vmem:[#allocation1 + $0x18] sm:$0xff pattern:$0x75316420]
    %v65 = vsel %vm40, %v55, -inf
    %v66 = vsel %vm40, %v56, -inf
    %v67 = vmax.f32 %v65, %v66
    %68 = vmax.xlane.f32.xlu0 %v67
    %v69 = vpop.xlane.xlu0 %68
    %v70 = vsel %vm40, %v59, -inf
    %v71 = vsel %vm40, %v60, -inf
    %v72 = vmax.f32 %v70, %v71
    %73 = vmax.xlane.f32.xlu0 %v72
    %v74 = vpop.xlane.xlu0 %73
    %v75 = vsel %vm40, %v69, -inf
    %v76 = vsel %vm40, %v74, -inf
    %v77 = vmax.f32 %v75, %v76
    %v78 = vsub.f32 %v77, %v53
    %v79 = vrcp.pop %v78
    %v80 = vmul.f32 %v78, %v79
    %v81 = vsub.f32 1.0, %v80
    %v82 = vmul.f32 %v79, %v81
    %v83 = vadd.f32 %v79, %v82
    %vm84 = vweird.f32 %v78
    %vm85 = vweird.f32 %v79
    %vm86 = vmor %vm84, %vm85
    %v87 = vsel %vm86, %v79, %v83
    %v88 = vand.u32 2147483647, %v78
    %vm89 = vcmp.eq.f32.partialorder %v88, 8.507059e+37
    %v90 = vand.u32 %v78, 2147483648
    %v91 = vor.u32 1.1754944e-38, %v90
    %v92 = vsel %vm89, %v91, %v87
    %v93 = vmul.f32 1.0, %v92
    %v96 = vunpack.c.l.s4 839922192
    %v97 = vunpack.c.0.s8 %v96
    %v98 = vperm.slane %v53, %v97
    %v100 = vsub.f32 %v25, %v98
    %v101 = vsub.f32 %v26, %v98
    %v104 = vunpack.c.l.s4 839922192
    %v105 = vunpack.c.0.s8 %v104
    %v106 = vperm.slane %v93, %v105
    %v108 = vmul.f32 %v100, %v106
    %v109 = vmul.f32 %v101, %v106
    %110 = vst [vmem:[#allocation5] sm:$0xff] %v108
    %111 = vst [vmem:[#allocation5 + $0x8] sm:$0xff] %v109
    // Predicated region
    $region10: #{tpu_custom_call.1} parent=1 // pred_check
      _
    $region11: #{tpu_custom_call.1} parent=1 // pred_check_branch
      %113 = sbr.rel (0) target = $region13
    $region12: #{tpu_custom_call.1} parent=1 // pred_region
      %115 = vsyncadd [#allocation4], 0
      %s116 = sshll.u32 [#allocation5], 4
      %s117 = int_to_ptr.vmem [resolvable:$true] %s116
      %s118 = sshll.u32 %s1, 4
      %s119 = int_to_ptr.hbm [resolvable:$true] %s118
      %124 = dma.vmem_to_hbm [thread:$0]  %s117, 256, %s119, [#allocation4], 128, 128, 8
    $region13: #{tpu_custom_call.1} parent=1 // pred_fallthru
      _
    // Predicated region
    $region14: #{tpu_custom_call.1} parent=1 // pred_check
      _
    $region15: #{tpu_custom_call.1} parent=1 // pred_check_branch
      %126 = sbr.rel (0) target = $region17
    $region16: #{tpu_custom_call.1} parent=1 // pred_region
      %128 = dma.done [#allocation4], 256
    $region17: #{tpu_custom_call.1} parent=1 // pred_fallthru
      _
    %129 = vsyncpa [#allocation3], 1
    %130 = vsyncpa [#allocation4], 1

</llo_original>
